<compile_context>
chip_gen: v6e
topology: v6e:2x2x1
jax: 0.10.0
libtpu: 0.0.40
codegen_flags: <defaults>
</compile_context>

<pallas_src>
import math

import jax
import jax.numpy as jnp
from jax.experimental import pallas as pl
from jax.experimental.pallas import tpu as pltpu


def _round_up(n, m):
    return ((n + m - 1) // m) * m


def _mlp_kernel(x_ref, w1_ref, w2_ref, b_ref, o_ref):
    hidden = w1_ref.shape[1]
    out_dim = w2_ref.shape[1]

    b = b_ref[...]  # (2, max(hidden, out_dim)) f32, rows = [b1 | pad], [b2 | pad]

    # fc1 on the MXU, accumulate in f32.
    h = jnp.dot(x_ref[...], w1_ref[...], preferred_element_type=jnp.float32)
    h = h + b[0:1, :hidden]          # f32 bias add (broadcast over batch rows)
    h = jnp.maximum(h, 0.0)          # f32 ReLU on the VPU

    # fc2: cast activations down only when the weights are narrower than f32.
    h_c = h if w2_ref.dtype == jnp.float32 else h.astype(w2_ref.dtype)
    y = jnp.dot(h_c, w2_ref[...], preferred_element_type=jnp.float32)
    y = y + b[1:2, :out_dim]
    o_ref[...] = y.astype(o_ref.dtype)


def reward_predictor_forward(x, w1, b1, w2, b2, *,
                             tile_b=512, compute_dtype=jnp.bfloat16):
    """x: (B, input_dim); w1: (input_dim, hidden); b1: (hidden,);
       w2: (hidden, output_dim); b2: (output_dim,). Returns (B, output_dim)
       in x.dtype. Matmuls run in `compute_dtype` with f32 accumulation."""
    B, in_dim = x.shape
    hidden = w1.shape[1]
    out_dim = w2.shape[1]
    out_dtype = x.dtype

    # Batch tile: multiple of 16 (covers bf16 sublane packing), capped at tile_b.
    tb = min(tile_b, _round_up(B, 16))
    tb = _round_up(tb, 16)
    b_pad = _round_up(B, tb)

    xc = x.astype(compute_dtype)
    if b_pad != B:
        xc = jnp.pad(xc, ((0, b_pad - B), (0, 0)))
    w1c = w1.astype(compute_dtype)
    w2c = w2.astype(compute_dtype)

    # Pack both biases into one small f32 buffer; rows start at lane 0.
    bw = max(hidden, out_dim)
    b_packed = jnp.zeros((2, bw), jnp.float32)
    b_packed = b_packed.at[0, :hidden].set(b1.astype(jnp.float32))
    b_packed = b_packed.at[1, :out_dim].set(b2.astype(jnp.float32))

    grid = (b_pad // tb,)
    out = pl.pallas_call(
        _mlp_kernel,
        out_shape=jax.ShapeDtypeStruct((b_pad, out_dim), out_dtype),
        grid=grid,
        in_specs=[
            pl.BlockSpec((tb, in_dim), lambda i: (i, 0)),       # x: batch-tiled
            pl.BlockSpec((in_dim, hidden), lambda i: (0, 0)),   # w1: resident
            pl.BlockSpec((hidden, out_dim), lambda i: (0, 0)),  # w2: resident
            pl.BlockSpec((2, bw), lambda i: (0, 0)),            # packed biases
        ],
        out_specs=pl.BlockSpec((tb, out_dim), lambda i: (i, 0)),
        compiler_params=pltpu.CompilerParams(
            dimension_semantics=("parallel",)),                 # megacore on v7x
    )(xc, w1c, w2c, b_packed)

    return out[:B] if b_pad != B else out


def _xavier_uniform(key, fan_in, fan_out, dtype=jnp.float32):
    # Matches torch.nn.init.xavier_uniform_ (gain=1): U(-a, a),
    # a = sqrt(6 / (fan_in + fan_out)). Sampled in PyTorch (out, in) order,
    # then transposed to the (in, out) layout used by the kernel.
    a = math.sqrt(6.0 / (fan_in + fan_out))
    w_pt = jax.random.uniform(key, (fan_out, fan_in), dtype=dtype,
                              minval=-a, maxval=a)
    return w_pt.T


def reference_forward(x, w1, b1, w2, b2):
    h = jnp.maximum(x @ w1 + b1, 0.0)
    return h @ w2 + b2


def reference_forward_bf16_emul(x, w1, b1, w2, b2):
    # Emulates the kernel's bf16-input / f32-accumulate matmuls.
    bf = lambda a: a.astype(jnp.bfloat16).astype(jnp.float32)
    h = jnp.maximum(bf(x) @ bf(w1) + b1, 0.0)
    return bf(h) @ bf(w2) + b2


if __name__ == "__main__":
    input_dim, hidden_dim, output_dim = 16, 32, 4
    batch = 8

    key = jax.random.PRNGKey(0)
    kx, kw1, kw2, kxb = jax.random.split(key, 4)

    x = jax.random.normal(kx, (batch, input_dim), dtype=jnp.float32)
    w1 = _xavier_uniform(kw1, input_dim, hidden_dim)   # (in, hidden)
    b1 = jnp.zeros((hidden_dim,), jnp.float32)
    w2 = _xavier_uniform(kw2, hidden_dim, output_dim)  # (hidden, out)
    b2 = jnp.zeros((output_dim,), jnp.float32)

    ref_f32 = reference_forward(x, w1, b1, w2, b2)

    # 1) f32 compute path: exact semantic match to fc2(relu(fc1(x))).
    out_f32 = jax.block_until_ready(
        reward_predictor_forward(x, w1, b1, w2, b2, compute_dtype=jnp.float32))
    assert out_f32.shape == (batch, output_dim)
    assert jnp.allclose(out_f32, ref_f32, atol=1e-5, rtol=1e-5)

    # 2) Default perf path: bf16 matmul inputs, f32 accumulate / bias / ReLU.
    out_bf16 = jax.block_until_ready(
        reward_predictor_forward(x, w1, b1, w2, b2))
    ref_bf16 = reference_forward_bf16_emul(x, w1, b1, w2, b2)
    assert out_bf16.shape == (batch, output_dim)
    assert jnp.allclose(out_bf16, ref_bf16, atol=5e-3, rtol=5e-3)
    assert jnp.allclose(out_bf16, ref_f32, atol=1e-1, rtol=5e-2)

    # 3) Larger batch exercising a multi-step grid + tail padding (B % tile != 0).
    xb = jax.random.normal(kxb, (200, input_dim), dtype=jnp.float32)
    out_b = jax.block_until_ready(
        reward_predictor_forward(xb, w1, b1, w2, b2, tile_b=64,
                                 compute_dtype=jnp.float32))
    assert out_b.shape == (200, output_dim)
    assert jnp.allclose(out_b, reference_forward(xb, w1, b1, w2, b2),
                        atol=1e-5, rtol=1e-5)

    print("KERNEL_OK")
</pallas_src>

<mosaic_0001>
module attributes {stable_mosaic.version = 11 : i64} {
  func.func @_mlp_kernel(%arg0: i32, %arg1: memref<16x16xf32, #tpu.memory_space<vmem>>, %arg2: memref<16x32xf32, #tpu.memory_space<vmem>>, %arg3: memref<32x4xf32, #tpu.memory_space<vmem>>, %arg4: memref<2x32xf32, #tpu.memory_space<vmem>>, %arg5: memref<16x4xf32, #tpu.memory_space<vmem>>) attributes {dimension_semantics = [#tpu.dimension_semantics<parallel>], iteration_bounds = array<i64: 1>, scalar_prefetch = 0 : i64, scratch_operands = 0 : i64, tpu.core_type = #tpu.core_type<tc>, window_params = [{transform_indices = @transform_0, window_bounds = array<i64: 16, 16>}, {pipeline_mode = #tpu.pipeline_mode<synchronous>, transform_indices = @transform_1, window_bounds = array<i64: 16, 32>}, {pipeline_mode = #tpu.pipeline_mode<synchronous>, transform_indices = @transform_2, window_bounds = array<i64: 32, 4>}, {pipeline_mode = #tpu.pipeline_mode<synchronous>, transform_indices = @transform_3, window_bounds = array<i64: 2, 32>}, {transform_indices = @transform_4, window_bounds = array<i64: 16, 4>}]} {
    %c0 = arith.constant 0 : index
    %c0_0 = arith.constant 0 : index
    %0 = vector.load %arg4[%c0, %c0_0] : memref<2x32xf32, #tpu.memory_space<vmem>>, vector<2x32xf32>
    %c0_1 = arith.constant 0 : index
    %c0_2 = arith.constant 0 : index
    %1 = vector.load %arg1[%c0_1, %c0_2] : memref<16x16xf32, #tpu.memory_space<vmem>>, vector<16x16xf32>
    %c0_3 = arith.constant 0 : index
    %c0_4 = arith.constant 0 : index
    %2 = vector.load %arg2[%c0_3, %c0_4] : memref<16x32xf32, #tpu.memory_space<vmem>>, vector<16x32xf32>
    %cst = arith.constant dense<0.000000e+00> : vector<16x32xf32>
    %3 = tpu.matmul %1, %2, %cst {dimension_numbers = #tpu.dot_dimension_numbers<[1], [0], [0], [1], [0, 0, 1, 1], [], []>} : vector<16x16xf32>, vector<16x32xf32>, vector<16x32xf32> -> vector<16x32xf32>
    %4 = vector.extract_strided_slice %0 {offsets = [0, 0], sizes = [1, 32], strides = [1, 1]} : vector<2x32xf32> to vector<1x32xf32>
    %5 = vector.broadcast %4 : vector<1x32xf32> to vector<16x32xf32>
    %6 = arith.addf %3, %5 : vector<16x32xf32>
    %cst_5 = arith.constant 0.000000e+00 : f32
    %7 = vector.broadcast %cst_5 : f32 to vector<16x32xf32>
    %8 = arith.maximumf %6, %7 : vector<16x32xf32>
    %c0_6 = arith.constant 0 : index
    %c0_7 = arith.constant 0 : index
    %9 = vector.load %arg3[%c0_6, %c0_7] : memref<32x4xf32, #tpu.memory_space<vmem>>, vector<32x4xf32>
    %cst_8 = arith.constant dense<0.000000e+00> : vector<16x4xf32>
    %10 = tpu.matmul %8, %9, %cst_8 {dimension_numbers = #tpu.dot_dimension_numbers<[1], [0], [0], [1], [0, 0, 1, 1], [], []>} : vector<16x32xf32>, vector<32x4xf32>, vector<16x4xf32> -> vector<16x4xf32>
    %11 = vector.extract_strided_slice %0 {offsets = [1, 0], sizes = [1, 4], strides = [1, 1]} : vector<2x32xf32> to vector<1x4xf32>
    %12 = vector.broadcast %11 : vector<1x4xf32> to vector<16x4xf32>
    %13 = arith.addf %10, %12 : vector<16x4xf32>
    %c0_9 = arith.constant 0 : index
    %c0_10 = arith.constant 0 : index
    %14 = vector.load %arg5[%c0_9, %c0_10] : memref<16x4xf32, #tpu.memory_space<vmem>>, vector<16x4xf32>
    tpu.vector_store %arg5[%c0_9, %c0_10], %13 {strides = array<i32>} : memref<16x4xf32, #tpu.memory_space<vmem>>, vector<16x4xf32>,
    return
  }
  func.func @transform_0(%arg0: i32) -> (i32, i32) {
    %c0_i32 = arith.constant 0 : i32
    %c0_i32_0 = arith.constant 0 : i32
    return %arg0, %c0_i32 : i32, i32
  }
  func.func @transform_1(%arg0: i32) -> (i32, i32) {
    %c0_i32 = arith.constant 0 : i32
    %c0_i32_0 = arith.constant 0 : i32
    %c0_i32_1 = arith.constant 0 : i32
    return %c0_i32, %c0_i32_0 : i32, i32
  }
  func.func @transform_2(%arg0: i32) -> (i32, i32) {
    %c0_i32 = arith.constant 0 : i32
    %c0_i32_0 = arith.constant 0 : i32
    %c0_i32_1 = arith.constant 0 : i32
    return %c0_i32, %c0_i32_0 : i32, i32
  }
  func.func @transform_3(%arg0: i32) -> (i32, i32) {
    %c0_i32 = arith.constant 0 : i32
    %c0_i32_0 = arith.constant 0 : i32
    %c0_i32_1 = arith.constant 0 : i32
    return %c0_i32, %c0_i32_0 : i32, i32
  }
  func.func @transform_4(%arg0: i32) -> (i32, i32) {
    %c0_i32 = arith.constant 0 : i32
    %c0_i32_0 = arith.constant 0 : i32
    return %arg0, %c0_i32 : i32, i32
  }
}

</mosaic_0001>

<llo_original>
// kernel: tpu_custom_call.1
$region0: #{tpu_custom_call.1}
  #allocation0 [shape = 'u32[]', space=smem, size = 0x4, offset = 0x4, fixed_abs, tag = 'smem constant byte address 0x4 - core index']
  #allocation1 [shape = 'u32[144,128]{1,0:T(1,128)}', space=vmem, size = 0x12000, scoped, tag = 'internal scratch']
  %s0 = inlined_call_operand.vmem [shape: f32[16,16], index: 0, kind: input, shape index: {}]
  %s1 = inlined_call_operand.vmem [shape: f32[16,32], index: 1, kind: input, shape index: {}]
  %s2 = inlined_call_operand.vmem [shape: f32[32,4], index: 2, kind: input, shape index: {}]
  %s3 = inlined_call_operand.vmem [shape: f32[2,32], index: 3, kind: input, shape index: {}]
  %s4 = inlined_call_operand.vmem [shape: f32[16,4], index: 4, kind: output, shape index: {}]
  %s5 = sld [smem:[#allocation0]]
  $region26: #{tpu_custom_call.1} parent=0
    _
  %s7 = ssub.s32 1, %s5
  %s8 = scalar_select 0, %s7, %s5
  // Predicated region
  $region2: #{tpu_custom_call.1} parent=0 // pred_check
    _
  $region3: #{tpu_custom_call.1} parent=0 // pred_check_branch
    %10 = sbr.rel (0) target = $region5
  $region4: #{tpu_custom_call.1} parent=0 // pred_region
    _
  $region5: #{tpu_custom_call.1} parent=0 // pred_fallthru
    _
  // Predicated region
  $region6: #{tpu_custom_call.1} parent=0 // pred_check
    _
  $region7: #{tpu_custom_call.1} parent=0 // pred_check_branch
    %12 = sbr.rel (0) target = $region9
  $region8: #{tpu_custom_call.1} parent=0 // pred_region
    _
  $region9: #{tpu_custom_call.1} parent=0 // pred_fallthru
    _
  // Predicated region
  $region10: #{tpu_custom_call.1} parent=0 // pred_check
    _
  $region11: #{tpu_custom_call.1} parent=0 // pred_check_branch
    %14 = sbr.rel (0) target = $region13
  $region12: #{tpu_custom_call.1} parent=0 // pred_region
    _
  $region13: #{tpu_custom_call.1} parent=0 // pred_fallthru
    _
  // Predicated region
  $region14: #{tpu_custom_call.1} parent=0 // pred_check
    _
  $region15: #{tpu_custom_call.1} parent=0 // pred_check_branch
    %16 = sbr.rel (0) target = $region17
  $region16: #{tpu_custom_call.1} parent=0 // pred_region
    _
  $region17: #{tpu_custom_call.1} parent=0 // pred_fallthru
    _
  %v17 = vld [vmem:[%s3] sm:$0x3]
  %v18 = vld [vmem:[%s0] sm:$0xff]
  %v19 = vld [vmem:[%s0 + $0x8] sm:$0xff]
  %v20 = vld [vmem:[%s1] sm:$0xff]
  %v21 = vld [vmem:[%s1 + $0x8] sm:$0xff]
  %v22 = vlaneseq
  %v23 = vshrl.u32 %v22, 7
  %v24 = vsub.s32 0, %v23
  %v25 = vrot.slane %v17, %v24
  %vm26 = vcmask 130048
  %v28 = vsel %vm26, %v18, 0
  %v31 = vsel %vm26, %v19, 0
  %33 = vmatprep.subr.mxu0 0.0
  %34 = vmatpush1.msra.mxu0 0.0
  %35 = vmatprep.subr.mxu0 0.0
  %36 = vmatpush1.msra.mxu0 0.0
  %37 = vmatprep.subr.mxu0 0.0
  %38 = vmatpush1.msra.mxu0 0.0
  %39 = vmatprep.subr.mxu0 0.0
  %40 = vmatpush1.msra.mxu0 0.0
  %41 = vmatprep.subr.mxu0 0.0
  %42 = vmatpush1.msra.mxu0 0.0
  %43 = vmatprep.subr.mxu0 0.0
  %44 = vmatpush1.msra.mxu0 0.0
  %45 = vmatprep.subr.mxu0 0.0
  %46 = vmatpush1.msra.mxu0 0.0
  %47 = vmatprep.subr.mxu0 0.0
  %48 = vmatpush1.msra.mxu0 0.0
  %49 = vmatprep.subr.mxu0 0.0
  %50 = vmatpush1.msra.mxu0 0.0
  %51 = vmatprep.subr.mxu0 0.0
  %52 = vmatpush1.msra.mxu0 0.0
  %53 = vmatprep.subr.mxu0 0.0
  %54 = vmatpush1.msra.mxu0 0.0
  %55 = vmatprep.subr.mxu0 0.0
  %56 = vmatpush1.msra.mxu0 0.0
  %57 = vmatprep.subr.mxu0 0.0
  %58 = vmatpush1.msra.mxu0 0.0
  %59 = vmatprep.subr.mxu0 0.0
  %60 = vmatpush1.msra.mxu0 0.0
  %61 = vmatprep.subr.mxu0 0.0
  %62 = vmatpush1.msra.mxu0 %v21
  %63 = vmatprep.subr.mxu0 0.0
  %64 = vmatpush1.msra.mxu0 %v20
  %65 = vmatprep.subr.mxu0 0.0
  %66 = vmatpush2.msra.mxu0 0.0
  %67 = vmatprep.subr.mxu0 0.0
  %68 = vmatpush2.msra.mxu0 0.0
  %69 = vmatprep.subr.mxu0 0.0
  %70 = vmatpush2.msra.mxu0 0.0
  %71 = vmatprep.subr.mxu0 0.0
  %72 = vmatpush2.msra.mxu0 0.0
  %73 = vmatprep.subr.mxu0 0.0
  %74 = vmatpush2.msra.mxu0 0.0
  %75 = vmatprep.subr.mxu0 0.0
  %76 = vmatpush2.msra.mxu0 0.0
  %77 = vmatprep.subr.mxu0 0.0
  %78 = vmatpush2.msra.mxu0 0.0
  %79 = vmatprep.subr.mxu0 0.0
  %80 = vmatpush2.msra.mxu0 0.0
  %81 = vmatprep.subr.mxu0 0.0
  %82 = vmatpush2.msra.mxu0 0.0
  %83 = vmatprep.subr.mxu0 0.0
  %84 = vmatpush2.msra.mxu0 0.0
  %85 = vmatprep.subr.mxu0 0.0
  %86 = vmatpush2.msra.mxu0 0.0
  %87 = vmatprep.subr.mxu0 0.0
  %88 = vmatpush2.msra.mxu0 0.0
  %89 = vmatprep.subr.mxu0 0.0
  %90 = vmatpush2.msra.mxu0 0.0
  %91 = vmatprep.subr.mxu0 0.0
  %92 = vmatpush2.msra.mxu0 0.0
  %93 = vmatprep.subr.mxu0 0.0
  %94 = vmatpush2.msra.mxu0 0.0
  %95 = vmatprep.subr.mxu0 0.0
  %96 = vmatpush2.msra.mxu0 0.0
  %97 = vmatprep.mubr.f32.mxu0 0.0
  %98 = vmatmul.mubr.f32.gmra.mxu0 %v28
  %v99 = vpop.f32.mrf.mxu0
  %v100 = vadd.f32 %v25, %v99
  %v101 = vpop.f32.mrf.mxu0
  %102 = vmatprep.mubr.f32.mxu0 0.0
  %103 = vmatmul.mubr.f32.gmra.mxu0 %v31
  %v104 = vpop.f32.mrf.mxu0
  %v105 = vadd.f32 %v25, %v104
  %v106 = vpop.f32.mrf.mxu0
  %107 = vdwg.mxu0
  %v108 = vmax.f32 %v100, 0.0
  %v109 = vmax.f32 %v105, 0.0
  %v110 = vld [vmem:[%s2] sm:$0xff]
  %v111 = vld [vmem:[%s2 + $0x8] sm:$0xff]
  %v112 = vld [vmem:[%s2 + $0x10] sm:$0xff]
  %v113 = vld [vmem:[%s2 + $0x18] sm:$0xff]
  %v114 = vlaneseq
  %v115 = vshrl.u32 %v114, 7
  %v116 = vsub.s32 1, %v115
  %v117 = vrot.slane %v17, %v116
  %vm118 = vcmask 261120
  %v120 = vsel %vm118, %v108, 0
  %v123 = vsel %vm118, %v109, 0
  %125 = vmatprep.subr.mxu0 0.0
  %126 = vmatpush1.msra.mxu0 0.0
  %127 = vmatprep.subr.mxu0 0.0
  %128 = vmatpush1.msra.mxu0 0.0
  %129 = vmatprep.subr.mxu0 0.0
  %130 = vmatpush1.msra.mxu0 0.0
  %131 = vmatprep.subr.mxu0 0.0
  %132 = vmatpush1.msra.mxu0 0.0
  %133 = vmatprep.subr.mxu0 0.0
  %134 = vmatpush1.msra.mxu0 0.0
  %135 = vmatprep.subr.mxu0 0.0
  %136 = vmatpush1.msra.mxu0 0.0
  %137 = vmatprep.subr.mxu0 0.0
  %138 = vmatpush1.msra.mxu0 0.0
  %139 = vmatprep.subr.mxu0 0.0
  %140 = vmatpush1.msra.mxu0 0.0
  %141 = vmatprep.subr.mxu0 0.0
  %142 = vmatpush1.msra.mxu0 0.0
  %143 = vmatprep.subr.mxu0 0.0
  %144 = vmatpush1.msra.mxu0 0.0
  %145 = vmatprep.subr.mxu0 0.0
  %146 = vmatpush1.msra.mxu0 0.0
  %147 = vmatprep.subr.mxu0 0.0
  %148 = vmatpush1.msra.mxu0 0.0
  %149 = vmatprep.subr.mxu0 0.0
  %150 = vmatpush1.msra.mxu0 %v113
  %151 = vmatprep.subr.mxu0 0.0
  %152 = vmatpush1.msra.mxu0 %v112
  %153 = vmatprep.subr.mxu0 0.0
  %154 = vmatpush1.msra.mxu0 %v111
  %155 = vmatprep.subr.mxu0 0.0
  %156 = vmatpush1.msra.mxu0 %v110
  %157 = vmatprep.subr.mxu0 0.0
  %158 = vmatpush2.msra.mxu0 0.0
  %159 = vmatprep.subr.mxu0 0.0
  %160 = vmatpush2.msra.mxu0 0.0
  %161 = vmatprep.subr.mxu0 0.0
  %162 = vmatpush2.msra.mxu0 0.0
  %163 = vmatprep.subr.mxu0 0.0
  %164 = vmatpush2.msra.mxu0 0.0
  %165 = vmatprep.subr.mxu0 0.0
  %166 = vmatpush2.msra.mxu0 0.0
  %167 = vmatprep.subr.mxu0 0.0
  %168 = vmatpush2.msra.mxu0 0.0
  %169 = vmatprep.subr.mxu0 0.0
  %170 = vmatpush2.msra.mxu0 0.0
  %171 = vmatprep.subr.mxu0 0.0
  %172 = vmatpush2.msra.mxu0 0.0
  %173 = vmatprep.subr.mxu0 0.0
  %174 = vmatpush2.msra.mxu0 0.0
  %175 = vmatprep.subr.mxu0 0.0
  %176 = vmatpush2.msra.mxu0 0.0
  %177 = vmatprep.subr.mxu0 0.0
  %178 = vmatpush2.msra.mxu0 0.0
  %179 = vmatprep.subr.mxu0 0.0
  %180 = vmatpush2.msra.mxu0 0.0
  %181 = vmatprep.subr.mxu0 0.0
  %182 = vmatpush2.msra.mxu0 0.0
  %183 = vmatprep.subr.mxu0 0.0
  %184 = vmatpush2.msra.mxu0 0.0
  %185 = vmatprep.subr.mxu0 0.0
  %186 = vmatpush2.msra.mxu0 0.0
  %187 = vmatprep.subr.mxu0 0.0
  %188 = vmatpush2.msra.mxu0 0.0
  %189 = vmatprep.mubr.f32.mxu0 0.0
  %190 = vmatmul.mubr.f32.gmra.mxu0 %v120
  %v191 = vpop.f32.mrf.mxu0
  %v192 = vadd.f32 %v117, %v191
  %v193 = vpop.f32.mrf.mxu0
  %194 = vmatprep.mubr.f32.mxu0 0.0
  %195 = vmatmul.mubr.f32.gmra.mxu0 %v123
  %v196 = vpop.f32.mrf.mxu0
  %v197 = vadd.f32 %v117, %v196
  %v198 = vpop.f32.mrf.mxu0
  %199 = vdwg.mxu0
  %vm200 = vcmask 31744
  %201 = vst.msk [vmem:[%s4] sm:$0xff] %vm200, %v192
  %202 = vst.msk [vmem:[%s4 + $0x8] sm:$0xff] %vm200, %v197
  // Predicated region
  $region18: #{tpu_custom_call.1} parent=0 // pred_check
    _
  $region19: #{tpu_custom_call.1} parent=0 // pred_check_branch
    %204 = sbr.rel (0) target = $region21
  $region20: #{tpu_custom_call.1} parent=0 // pred_region
    _
  $region21: #{tpu_custom_call.1} parent=0 // pred_fallthru
    _
  // Predicated region
  $region22: #{tpu_custom_call.1} parent=0 // pred_check
    _
  $region23: #{tpu_custom_call.1} parent=0 // pred_check_branch
    %206 = sbr.rel (0) target = $region25
  $region24: #{tpu_custom_call.1} parent=0 // pred_region
    _
  $region25: #{tpu_custom_call.1} parent=0 // pred_fallthru
    _

</llo_original>
